<compile_context>
chip_gen: v7x
topology: tpu7x:2x2x1
jax: 0.10.0
libtpu: 0.0.40
codegen_flags: <defaults>
</compile_context>

<pallas_src>
import functools

import numpy as np
import jax
import jax.numpy as jnp
from jax.experimental import pallas as pl
from jax.experimental.pallas import tpu as pltpu


def _round_up(x, m):
    return (x + m - 1) // m * m


def _pick_tile(hw, w, block_cols):
    """Largest TP <= block_cols with TP % 128 == 0, TP % W == 0, HW % TP == 0."""
    base = int(np.lcm(128, w))
    cands = [t for t in range(base, hw + 1, base) if hw % t == 0]
    assert cands, f"no valid lane tile for H*W={hw}, W={w} (fixed-geometry assumption)"
    fitting = [t for t in cands if t <= block_cols]
    return max(fitting) if fitting else min(cands)


# ----------------------------------------------------------------------------
# Kernel: manual-DMA'd halo window -> tap slab -> one fused MXU dot -> sigmoid
#         -> bf16 heatmap store + f32 SSE accumulation.
# ----------------------------------------------------------------------------
def _make_kernel(c_in_pad, c_out_pad, w_img, tp, tph, n_tiles):
    def kernel(x_hbm, w_ref, b_ref, col_ref, tgt_ref,      # inputs
               hm_ref, sse_ref,                             # outputs
               xbuf, slab_ref, sem):                        # scratch
        # x_hbm   : (N, c_in_pad, L)        bf16 HBM (pl.ANY), padded flat input
        # w_ref   : (c_out_pad, 9*c_in_pad) bf16 resident weights (k = dy*3+dx)
        # b_ref   : (c_out_pad, 1)          f32  resident bias
        # col_ref : (1, tp)                 i32  resident column-in-row ids
        # tgt_ref : (c_out_pad, tp)         bf16 target tile
        # hm_ref  : (c_out_pad, tp)         bf16 predicted heatmap tile (out)
        # sse_ref : (c_out_pad, 128)        f32  per-image SSE partials (out, revisited)
        # xbuf    : (2, c_in_pad, tph)      bf16 double-buffered input window
        # slab_ref: (9*c_in_pad, tp)        bf16 stacked tap slab (MXU rhs)
        n = pl.program_id(0)
        j = pl.program_id(1)
        slot = jax.lax.rem(j, 2)

        def x_window(jj):
            start = pl.multiple_of(jj * tp, 128)            # lane-aligned window
            return x_hbm.at[n, :, pl.ds(start, tph)]

        # ---- manual double-buffered DMA of the halo'd input window ---------
        @pl.when(j == 0)
        def _():  # first tile of this image: nothing was prefetched yet
            pltpu.make_async_copy(x_window(j), xbuf.at[slot], sem.at[slot]).start()
            sse_ref[...] = jnp.zeros_like(sse_ref)

        pltpu.make_async_copy(x_window(j), xbuf.at[slot], sem.at[slot]).wait()

        @pl.when(j + 1 < n_tiles)
        def _():  # prefetch the next tile of the same image into the other slot
            jn = jnp.minimum(j + 1, n_tiles - 1)
            pltpu.make_async_copy(x_window(jn), xbuf.at[1 - slot],
                                  sem.at[1 - slot]).start()

        # ---- boundary masks from the resident column ids (no per-tile mod) --
        col = col_ref[...]                       # (1, tp) int32
        mask_l = col >= 1                        # dx == 0 tap valid for w >= 1
        mask_r = col <= w_img - 2                # dx == 2 tap valid for w <= W-2

        # ---- build the (9*c_in_pad, tp) tap slab, then ONE fused MXU dot ----
        for dy in range(3):
            for dx in range(3):
                k = dy * 3 + dx
                s = dy * w_img + dx              # static in-window offset
                tap = xbuf[slot, :, s:s + tp]    # (c_in_pad, tp) bf16
                if dx == 0:
                    tap = jnp.where(mask_l, tap, jnp.zeros_like(tap))
                elif dx == 2:
                    tap = jnp.where(mask_r, tap, jnp.zeros_like(tap))
                slab_ref[k * c_in_pad:(k + 1) * c_in_pad, :] = tap

        logits = jnp.dot(w_ref[...], slab_ref[...],
                         preferred_element_type=jnp.float32)   # (c_out_pad, tp)
        logits = logits + b_ref[...]                            # bcast over lanes
        hm = jax.nn.sigmoid(logits)                             # EUP, f32
        hm_ref[...] = hm.astype(hm_ref.dtype)                   # bf16 store

        # ---- squared error, collapsed to a lane-dense (c_out_pad, 128) block
        diff = hm - tgt_ref[...].astype(jnp.float32)
        d2 = diff * diff
        part = d2[:, 0:128]
        for g in range(1, tp // 128):                           # 128-aligned slices
            part = part + d2[:, g * 128:(g + 1) * 128]
        sse_ref[...] = sse_ref[...] + part

    return kernel


# ----------------------------------------------------------------------------
# Wrapper: mirrors ModelWithLoss.forward -> (outputs[-1], loss, loss_stats)
# ----------------------------------------------------------------------------
def model_with_loss_forward(batch, conv_w, conv_b, *, block_cols=2048):
    x = batch["input"]            # (N, C_in, H, W)  NCHW f32
    hm_tgt = batch["hm"]          # (N, C_out, H, W)
    N, C_in, H, W = x.shape
    C_out = conv_w.shape[0]
    HW = H * W

    TP = _pick_tile(HW, W, block_cols)
    n_tiles = HW // TP
    halo = W + 1                              # covers every 3x3 tap offset
    TPH = _round_up(TP + 2 * halo, 128)       # 128-padded DMA window length
    L = (n_tiles - 1) * TP + TPH              # padded flat length per channel
    C_in_p = _round_up(C_in, 16)              # bf16 sublane-pack alignment
    C_out_p = _round_up(C_out, 16)

    # ---- layout plumbing: ONE padded copy of x in HBM, no per-tile stack ----
    xf = x.reshape(N, C_in, HW)
    xpad = jnp.pad(xf, ((0, 0), (0, C_in_p - C_in),
                        (halo, L - halo - HW))).astype(jnp.bfloat16)

    # Weights as one (C_out_p, 9*C_in_p) bf16 matrix; row-block k = dy*3 + dx.
    w9 = jnp.transpose(conv_w, (0, 2, 3, 1))                       # (C_out,3,3,C_in)
    w9 = jnp.pad(w9, ((0, C_out_p - C_out), (0, 0), (0, 0), (0, C_in_p - C_in)))
    w9 = w9.reshape(C_out_p, 9 * C_in_p).astype(jnp.bfloat16)
    b_col = jnp.pad(conv_b, (0, C_out_p - C_out)).reshape(C_out_p, 1).astype(jnp.float32)

    # Padded output channels produce logits == 0 -> sigmoid == 0.5 exactly, so
    # padding the target with 0.5 makes them contribute exactly 0 to the SSE.
    tgt = hm_tgt.reshape(N, C_out, HW)
    tgt = jnp.pad(tgt, ((0, 0), (0, C_out_p - C_out), (0, 0)),
                  constant_values=0.5).astype(jnp.bfloat16)

    col_ids = (jnp.arange(TP, dtype=jnp.int32) % W).reshape(1, TP)

    kernel = _make_kernel(C_in_p, C_out_p, W, TP, TPH, n_tiles)
    flops = 2 * N * HW * (9 * C_in_p) * C_out_p
    bytes_accessed = (xpad.size * 2 + w9.size * 2 + b_col.size * 4
                      + col_ids.size * 4 + tgt.size * 2
                      + N * C_out_p * HW * 2 + N * C_out_p * 128 * 4)

    hm_flat, sse = pl.pallas_call(
        kernel,
        out_shape=(
            jax.ShapeDtypeStruct((N, C_out_p, HW), jnp.bfloat16),   # heatmap (bf16)
            jax.ShapeDtypeStruct((N, C_out_p, 128), jnp.float32),   # SSE partials
        ),
        grid_spec=pltpu.PrefetchScalarGridSpec(
            num_scalar_prefetch=0,
            grid=(N, n_tiles),
            in_specs=[
                pl.BlockSpec(memory_space=pl.ANY),                          # x (HBM)
                pl.BlockSpec((C_out_p, 9 * C_in_p), lambda n, j: (0, 0)),   # weights
                pl.BlockSpec((C_out_p, 1), lambda n, j: (0, 0)),            # bias
                pl.BlockSpec((1, TP), lambda n, j: (0, 0)),                 # col ids
                pl.BlockSpec((None, C_out_p, TP), lambda n, j: (n, 0, j)),  # target
            ],
            out_specs=[
                pl.BlockSpec((None, C_out_p, TP), lambda n, j: (n, 0, j)),  # hm
                pl.BlockSpec((None, C_out_p, 128), lambda n, j: (n, 0, 0)), # SSE acc
            ],
            scratch_shapes=[
                pltpu.VMEM((2, C_in_p, TPH), jnp.bfloat16),    # double-buffered x
                pltpu.VMEM((9 * C_in_p, TP), jnp.bfloat16),    # fused-dot tap slab
                pltpu.SemaphoreType.DMA((2,)),
            ],
        ),
        compiler_params=pltpu.CompilerParams(
            dimension_semantics=("parallel", "arbitrary"),
            vmem_limit_bytes=32 * 1024 * 1024,       # headroom on v7x's 64 MiB/TC
        ),
        cost_estimate=pl.CostEstimate(
            flops=flops,
            transcendentals=N * HW * C_out_p,
            bytes_accessed=bytes_accessed),
    )(xpad, w9, b_col, col_ids, tgt)

    hm = hm_flat[:, :C_out, :].reshape(N, C_out, H, W)               # bf16
    loss = jnp.sum(sse[:, :C_out, :]) * jnp.float32(1.0 / (N * C_out * HW))
    outputs = [{"hm": hm}]                       # 1-stack model output list
    loss_stats = {"loss": loss, "hm_loss": loss}
    return outputs[-1], loss, loss_stats


if __name__ == "__main__":
    key = jax.random.PRNGKey(0)
    k_in, k_hm, k_w, k_b = jax.random.split(key, 4)

    N, C_in, H, W = 2, 4, 16, 16
    C_out = 4

    batch = {
        "input": jax.random.normal(k_in, (N, C_in, H, W), dtype=jnp.float32),
        "hm": jax.nn.sigmoid(
            jax.random.normal(k_hm, (N, C_out, H, W), dtype=jnp.float32)),
    }
    fan_in = float(C_in * 3 * 3)
    conv_w = jax.random.normal(k_w, (C_out, C_in, 3, 3), dtype=jnp.float32) * (
        1.0 / np.sqrt(fan_in))
    conv_b = jax.random.normal(k_b, (C_out,), dtype=jnp.float32) * 0.01

    # block_cols=128 forces n_tiles=2 at this toy size so the manual DMA
    # prefetch chain and the SSE accumulator are exercised (default is 2048).
    fwd = jax.jit(functools.partial(model_with_loss_forward, block_cols=128))
    out_last, loss, loss_stats = fwd(batch, conv_w, conv_b)
    jax.block_until_ready((out_last["hm"], loss))

    # Independent pure-XLA f32 reference (loose tolerance: kernel uses bf16 MXU
    # operands and bf16 tgt/hm HBM streams).
    logits_ref = jax.lax.conv_general_dilated(
        batch["input"], conv_w, (1, 1), ((1, 1), (1, 1)),
        dimension_numbers=("NCHW", "OIHW", "NCHW"),
        precision=jax.lax.Precision.HIGHEST,
    ) + conv_b.reshape(1, C_out, 1, 1)
    hm_expected = jax.nn.sigmoid(logits_ref)
    loss_expected = jnp.mean((hm_expected - batch["hm"]) ** 2)

    assert out_last["hm"].shape == (N, C_out, H, W)
    assert loss.shape == ()
    hm_pred = np.asarray(out_last["hm"].astype(jnp.float32))
    np.testing.assert_allclose(hm_pred, np.asarray(hm_expected),
                               atol=2e-2, rtol=2e-2)
    np.testing.assert_allclose(float(loss), float(loss_expected),
                               rtol=5e-2, atol=1e-5)
    print("KERNEL_OK")
</pallas_src>

<mosaic_0001>
module attributes {stable_mosaic.version = 11 : i64} {
  func.func @kernel(%arg0: i32, %arg1: i32, %arg2: memref<2x16x384xbf16, #tpu.memory_space<any>>, %arg3: memref<16x144xbf16, #tpu.memory_space<vmem>>, %arg4: memref<16x1xf32, #tpu.memory_space<vmem>>, %arg5: memref<1x128xi32, #tpu.memory_space<vmem>>, %arg6: memref<1x16x128xbf16, #tpu.memory_space<vmem>>, %arg7: memref<1x16x128xbf16, #tpu.memory_space<vmem>>, %arg8: memref<1x16x128xf32, #tpu.memory_space<vmem>>, %arg9: memref<2x16x256xbf16, #tpu.memory_space<vmem>>, %arg10: memref<144x128xbf16, #tpu.memory_space<vmem>>, %arg11: memref<2x!tpu.dma_semaphore, #tpu.memory_space<semaphore_mem>>) attributes {dimension_semantics = [#tpu.dimension_semantics<parallel>, #tpu.dimension_semantics<arbitrary>], iteration_bounds = array<i64: 2, 2>, scalar_prefetch = 0 : i64, scratch_operands = 3 : i64, tpu.core_type = #tpu.core_type<tc>, window_params = [{}, {pipeline_mode = #tpu.pipeline_mode<synchronous>, transform_indices = @transform_1, window_bounds = array<i64: 16, 144>}, {pipeline_mode = #tpu.pipeline_mode<synchronous>, transform_indices = @transform_2, window_bounds = array<i64: 16, 1>}, {pipeline_mode = #tpu.pipeline_mode<synchronous>, transform_indices = @transform_3, window_bounds = array<i64: 1, 128>}, {transform_indices = @transform_4, window_bounds = array<i64: 1, 16, 128>}, {transform_indices = @transform_5, window_bounds = array<i64: 1, 16, 128>}, {transform_indices = @transform_6, window_bounds = array<i64: 1, 16, 128>}]} {
    %c2_i32 = arith.constant 2 : i32
    %0 = arith.remsi %arg1, %c2_i32 : i32
    %c0_i32 = arith.constant 0 : i32
    %1 = arith.cmpi eq, %arg1, %c0_i32 : i32
    %2 = arith.extui %1 : i1 to i32
    %c0_i32_0 = arith.constant 0 : i32
    %3 = arith.cmpi ne, %2, %c0_i32_0 : i32
    scf.if %3 {
      %c128_i32_55 = arith.constant 128 : i32
      %107 = arith.muli %arg1, %c128_i32_55 : i32
      %108 = tpu.assume_multiple %107, 128 : i32
      %c0_i32_56 = arith.constant 0 : i32
      %109 = tpu.memref_slice %arg2[%arg0, %c0_i32_56, %108] : memref<2x16x384xbf16, #tpu.memory_space<any>> -> memref<1x16x256xbf16, #tpu.memory_space<any>>
      %110 = tpu.memref_squeeze %109 : memref<1x16x256xbf16, #tpu.memory_space<any>> -> memref<16x256xbf16, #tpu.memory_space<any>>
      %c0_i32_57 = arith.constant 0 : i32
      %c0_i32_58 = arith.constant 0 : i32
      %111 = tpu.memref_slice %arg9[%0, %c0_i32_57, %c0_i32_58] : memref<2x16x256xbf16, #tpu.memory_space<vmem>> -> memref<1x16x256xbf16, #tpu.memory_space<vmem>>
      %112 = tpu.memref_squeeze %111 : memref<1x16x256xbf16, #tpu.memory_space<vmem>> -> memref<16x256xbf16, #tpu.memory_space<vmem>>
      %113 = tpu.memref_slice %arg11[%0] : memref<2x!tpu.dma_semaphore, #tpu.memory_space<semaphore_mem>> -> memref<1x!tpu.dma_semaphore, #tpu.memory_space<semaphore_mem>>
      %114 = tpu.memref_squeeze %113 : memref<1x!tpu.dma_semaphore, #tpu.memory_space<semaphore_mem>> -> memref<!tpu.dma_semaphore, #tpu.memory_space<semaphore_mem>>
      tpu.enqueue_dma source(%110 : memref<16x256xbf16, #tpu.memory_space<any>>) target(%112 : memref<16x256xbf16, #tpu.memory_space<vmem>>) target_semaphore(%114 : memref<!tpu.dma_semaphore, #tpu.memory_space<semaphore_mem>>)
      %cst_59 = arith.constant 0.000000e+00 : f32
      %115 = vector.broadcast %cst_59 : f32 to vector<16x128xf32>
      %c0_60 = arith.constant 0 : index
      %c0_61 = arith.constant 0 : index
      %c0_62 = arith.constant 0 : index
      %116 = vector.load %arg8[%c0_60, %c0_61, %c0_62] : memref<1x16x128xf32, #tpu.memory_space<vmem>>, vector<1x16x128xf32>
      %117 = vector.shape_cast %116 : vector<1x16x128xf32> to vector<16x128xf32>
      %118 = vector.shape_cast %115 : vector<16x128xf32> to vector<1x16x128xf32>
      tpu.vector_store %arg8[%c0_60, %c0_61, %c0_62], %118 {strides = array<i32>} : memref<1x16x128xf32, #tpu.memory_space<vmem>>, vector<1x16x128xf32>,
    } else {
    }
    %c128_i32 = arith.constant 128 : i32
    %4 = arith.muli %arg1, %c128_i32 : i32
    %5 = tpu.assume_multiple %4, 128 : i32
    %c0_i32_1 = arith.constant 0 : i32
    %6 = tpu.memref_slice %arg2[%arg0, %c0_i32_1, %5] : memref<2x16x384xbf16, #tpu.memory_space<any>> -> memref<1x16x256xbf16, #tpu.memory_space<any>>
    %7 = tpu.memref_squeeze %6 : memref<1x16x256xbf16, #tpu.memory_space<any>> -> memref<16x256xbf16, #tpu.memory_space<any>>
    %c0_i32_2 = arith.constant 0 : i32
    %c0_i32_3 = arith.constant 0 : i32
    %8 = tpu.memref_slice %arg9[%0, %c0_i32_2, %c0_i32_3] : memref<2x16x256xbf16, #tpu.memory_space<vmem>> -> memref<1x16x256xbf16, #tpu.memory_space<vmem>>
    %9 = tpu.memref_squeeze %8 : memref<1x16x256xbf16, #tpu.memory_space<vmem>> -> memref<16x256xbf16, #tpu.memory_space<vmem>>
    %10 = tpu.memref_slice %arg11[%0] : memref<2x!tpu.dma_semaphore, #tpu.memory_space<semaphore_mem>> -> memref<1x!tpu.dma_semaphore, #tpu.memory_space<semaphore_mem>>
    %11 = tpu.memref_squeeze %10 : memref<1x!tpu.dma_semaphore, #tpu.memory_space<semaphore_mem>> -> memref<!tpu.dma_semaphore, #tpu.memory_space<semaphore_mem>>
    tpu.wait_dma2 semaphore(%11 : memref<!tpu.dma_semaphore, #tpu.memory_space<semaphore_mem>>) src(%7 : memref<16x256xbf16, #tpu.memory_space<any>>) dst(%9 : memref<16x256xbf16, #tpu.memory_space<vmem>>)
    %c1_i32 = arith.constant 1 : i32
    %12 = arith.addi %arg1, %c1_i32 : i32
    %c2_i32_4 = arith.constant 2 : i32
    %13 = arith.cmpi slt, %12, %c2_i32_4 : i32
    %14 = arith.extui %13 : i1 to i32
    %c0_i32_5 = arith.constant 0 : i32
    %15 = arith.cmpi ne, %14, %c0_i32_5 : i32
    scf.if %15 {
      %c1_i32_55 = arith.constant 1 : i32
      %107 = arith.addi %arg1, %c1_i32_55 : i32
      %c1_i32_56 = arith.constant 1 : i32
      %108 = arith.minsi %107, %c1_i32_56 : i32
      %c128_i32_57 = arith.constant 128 : i32
      %109 = arith.muli %108, %c128_i32_57 : i32
      %110 = tpu.assume_multiple %109, 128 : i32
      %c1_i32_58 = arith.constant 1 : i32
      %111 = arith.subi %c1_i32_58, %0 : i32
      %c1_i32_59 = arith.constant 1 : i32
      %112 = arith.subi %c1_i32_59, %0 : i32
      %c0_i32_60 = arith.constant 0 : i32
      %113 = tpu.memref_slice %arg2[%arg0, %c0_i32_60, %110] : memref<2x16x384xbf16, #tpu.memory_space<any>> -> memref<1x16x256xbf16, #tpu.memory_space<any>>
      %114 = tpu.memref_squeeze %113 : memref<1x16x256xbf16, #tpu.memory_space<any>> -> memref<16x256xbf16, #tpu.memory_space<any>>
      %c0_i32_61 = arith.constant 0 : i32
      %c0_i32_62 = arith.constant 0 : i32
      %115 = tpu.memref_slice %arg9[%111, %c0_i32_61, %c0_i32_62] : memref<2x16x256xbf16, #tpu.memory_space<vmem>> -> memref<1x16x256xbf16, #tpu.memory_space<vmem>>
      %116 = tpu.memref_squeeze %115 : memref<1x16x256xbf16, #tpu.memory_space<vmem>> -> memref<16x256xbf16, #tpu.memory_space<vmem>>
      %117 = tpu.memref_slice %arg11[%112] : memref<2x!tpu.dma_semaphore, #tpu.memory_space<semaphore_mem>> -> memref<1x!tpu.dma_semaphore, #tpu.memory_space<semaphore_mem>>
      %118 = tpu.memref_squeeze %117 : memref<1x!tpu.dma_semaphore, #tpu.memory_space<semaphore_mem>> -> memref<!tpu.dma_semaphore, #tpu.memory_space<semaphore_mem>>
      tpu.enqueue_dma source(%114 : memref<16x256xbf16, #tpu.memory_space<any>>) target(%116 : memref<16x256xbf16, #tpu.memory_space<vmem>>) target_semaphore(%118 : memref<!tpu.dma_semaphore, #tpu.memory_space<semaphore_mem>>)
    } else {
    }
    %c0 = arith.constant 0 : index
    %c0_6 = arith.constant 0 : index
    %16 = vector.load %arg5[%c0, %c0_6] : memref<1x128xi32, #tpu.memory_space<vmem>>, vector<1x128xi32>
    %c1_i32_7 = arith.constant 1 : i32
    %17 = vector.broadcast %c1_i32_7 : i32 to vector<1x128xi32>
    %18 = arith.cmpi sge, %16, %17 : vector<1x128xi32>
    %c14_i32 = arith.constant 14 : i32
    %19 = vector.broadcast %c14_i32 : i32 to vector<1x128xi32>
    %20 = arith.cmpi sle, %16, %19 : vector<1x128xi32>
    %21 = arith.index_cast %0 : i32 to index
    %c0_8 = arith.constant 0 : index
    %c0_9 = arith.constant 0 : index
    %22 = vector.load %arg9[%21, %c0_8, %c0_9] : memref<2x16x256xbf16, #tpu.memory_space<vmem>>, vector<1x16x128xbf16>
    %23 = vector.shape_cast %22 : vector<1x16x128xbf16> to vector<16x128xbf16>
    %cst = arith.constant 0.000000e+00 : bf16
    %24 = vector.broadcast %cst : bf16 to vector<16x128xbf16>
    %25 = vector.shape_cast %18 : vector<1x128xi1> to vector<1x128xi1>
    %26 = vector.broadcast %25 : vector<1x128xi1> to vector<16x128xi1>
    %27 = arith.select %26, %23, %24 : vector<16x128xi1>, vector<16x128xbf16>
    %c0_10 = arith.constant 0 : index
    %c0_11 = arith.constant 0 : index
    %28 = vector.load %arg10[%c0_10, %c0_11] : memref<144x128xbf16, #tpu.memory_space<vmem>>, vector<16x128xbf16>
    tpu.vector_store %arg10[%c0_10, %c0_11], %27 {strides = array<i32>} : memref<144x128xbf16, #tpu.memory_space<vmem>>, vector<16x128xbf16>,
    %29 = arith.index_cast %0 : i32 to index
    %c0_12 = arith.constant 0 : index
    %c1 = arith.constant 1 : index
    %30 = vector.load %arg9[%29, %c0_12, %c1] : memref<2x16x256xbf16, #tpu.memory_space<vmem>>, vector<1x16x128xbf16>
    %31 = vector.shape_cast %30 : vector<1x16x128xbf16> to vector<16x128xbf16>
    %c16 = arith.constant 16 : index
    %c0_13 = arith.constant 0 : index
    %32 = vector.load %arg10[%c16, %c0_13] : memref<144x128xbf16, #tpu.memory_space<vmem>>, vector<16x128xbf16>
    tpu.vector_store %arg10[%c16, %c0_13], %31 {strides = array<i32>} : memref<144x128xbf16, #tpu.memory_space<vmem>>, vector<16x128xbf16>,
    %33 = arith.index_cast %0 : i32 to index
    %c0_14 = arith.constant 0 : index
    %c2 = arith.constant 2 : index
    %34 = vector.load %arg9[%33, %c0_14, %c2] : memref<2x16x256xbf16, #tpu.memory_space<vmem>>, vector<1x16x128xbf16>
    %35 = vector.shape_cast %34 : vector<1x16x128xbf16> to vector<16x128xbf16>
    %cst_15 = arith.constant 0.000000e+00 : bf16
    %36 = vector.broadcast %cst_15 : bf16 to vector<16x128xbf16>
    %37 = vector.shape_cast %20 : vector<1x128xi1> to vector<1x128xi1>
    %38 = vector.broadcast %37 : vector<1x128xi1> to vector<16x128xi1>
    %39 = arith.select %38, %35, %36 : vector<16x128xi1>, vector<16x128xbf16>
    %c32 = arith.constant 32 : index
    %c0_16 = arith.constant 0 : index
    %40 = vector.load %arg10[%c32, %c0_16] : memref<144x128xbf16, #tpu.memory_space<vmem>>, vector<16x128xbf16>
    tpu.vector_store %arg10[%c32, %c0_16], %39 {strides = array<i32>} : memref<144x128xbf16, #tpu.memory_space<vmem>>, vector<16x128xbf16>,
    %41 = arith.index_cast %0 : i32 to index
    %c0_17 = arith.constant 0 : index
    %c16_18 = arith.constant 16 : index
    %42 = vector.load %arg9[%41, %c0_17, %c16_18] : memref<2x16x256xbf16, #tpu.memory_space<vmem>>, vector<1x16x128xbf16>
    %43 = vector.shape_cast %42 : vector<1x16x128xbf16> to vector<16x128xbf16>
    %cst_19 = arith.constant 0.000000e+00 : bf16
    %44 = vector.broadcast %cst_19 : bf16 to vector<16x128xbf16>
    %45 = vector.shape_cast %18 : vector<1x128xi1> to vector<1x128xi1>
    %46 = vector.broadcast %45 : vector<1x128xi1> to vector<16x128xi1>
    %47 = arith.select %46, %43, %44 : vector<16x128xi1>, vector<16x128xbf16>
    %c48 = arith.constant 48 : index
    %c0_20 = arith.constant 0 : index
    %48 = vector.load %arg10[%c48, %c0_20] : memref<144x128xbf16, #tpu.memory_space<vmem>>, vector<16x128xbf16>
    tpu.vector_store %arg10[%c48, %c0_20], %47 {strides = array<i32>} : memref<144x128xbf16, #tpu.memory_space<vmem>>, vector<16x128xbf16>,
    %49 = arith.index_cast %0 : i32 to index
    %c0_21 = arith.constant 0 : index
    %c17 = arith.constant 17 : index
    %50 = vector.load %arg9[%49, %c0_21, %c17] : memref<2x16x256xbf16, #tpu.memory_space<vmem>>, vector<1x16x128xbf16>
    %51 = vector.shape_cast %50 : vector<1x16x128xbf16> to vector<16x128xbf16>
    %c64 = arith.constant 64 : index
    %c0_22 = arith.constant 0 : index
    %52 = vector.load %arg10[%c64, %c0_22] : memref<144x128xbf16, #tpu.memory_space<vmem>>, vector<16x128xbf16>
    tpu.vector_store %arg10[%c64, %c0_22], %51 {strides = array<i32>} : memref<144x128xbf16, #tpu.memory_space<vmem>>, vector<16x128xbf16>,
    %53 = arith.index_cast %0 : i32 to index
    %c0_23 = arith.constant 0 : index
    %c18 = arith.constant 18 : index
    %54 = vector.load %arg9[%53, %c0_23, %c18] : memref<2x16x256xbf16, #tpu.memory_space<vmem>>, vector<1x16x128xbf16>
    %55 = vector.shape_cast %54 : vector<1x16x128xbf16> to vector<16x128xbf16>
    %cst_24 = arith.constant 0.000000e+00 : bf16
    %56 = vector.broadcast %cst_24 : bf16 to vector<16x128xbf16>
    %57 = vector.shape_cast %20 : vector<1x128xi1> to vector<1x128xi1>
    %58 = vector.broadcast %57 : vector<1x128xi1> to vector<16x128xi1>
    %59 = arith.select %58, %55, %56 : vector<16x128xi1>, vector<16x128xbf16>
    %c80 = arith.constant 80 : index
    %c0_25 = arith.constant 0 : index
    %60 = vector.load %arg10[%c80, %c0_25] : memref<144x128xbf16, #tpu.memory_space<vmem>>, vector<16x128xbf16>
    tpu.vector_store %arg10[%c80, %c0_25], %59 {strides = array<i32>} : memref<144x128xbf16, #tpu.memory_space<vmem>>, vector<16x128xbf16>,
    %61 = arith.index_cast %0 : i32 to index
    %c0_26 = arith.constant 0 : index
    %c32_27 = arith.constant 32 : index
    %62 = vector.load %arg9[%61, %c0_26, %c32_27] : memref<2x16x256xbf16, #tpu.memory_space<vmem>>, vector<1x16x128xbf16>
    %63 = vector.shape_cast %62 : vector<1x16x128xbf16> to vector<16x128xbf16>
    %cst_28 = arith.constant 0.000000e+00 : bf16
    %64 = vector.broadcast %cst_28 : bf16 to vector<16x128xbf16>
    %65 = vector.shape_cast %18 : vector<1x128xi1> to vector<1x128xi1>
    %66 = vector.broadcast %65 : vector<1x128xi1> to vector<16x128xi1>
    %67 = arith.select %66, %63, %64 : vector<16x128xi1>, vector<16x128xbf16>
    %c96 = arith.constant 96 : index
    %c0_29 = arith.constant 0 : index
    %68 = vector.load %arg10[%c96, %c0_29] : memref<144x128xbf16, #tpu.memory_space<vmem>>, vector<16x128xbf16>
    tpu.vector_store %arg10[%c96, %c0_29], %67 {strides = array<i32>} : memref<144x128xbf16, #tpu.memory_space<vmem>>, vector<16x128xbf16>,
    %69 = arith.index_cast %0 : i32 to index
    %c0_30 = arith.constant 0 : index
    %c33 = arith.constant 33 : index
    %70 = vector.load %arg9[%69, %c0_30, %c33] : memref<2x16x256xbf16, #tpu.memory_space<vmem>>, vector<1x16x128xbf16>
    %71 = vector.shape_cast %70 : vector<1x16x128xbf16> to vector<16x128xbf16>
    %c112 = arith.constant 112 : index
    %c0_31 = arith.constant 0 : index
    %72 = vector.load %arg10[%c112, %c0_31] : memref<144x128xbf16, #tpu.memory_space<vmem>>, vector<16x128xbf16>
    tpu.vector_store %arg10[%c112, %c0_31], %71 {strides = array<i32>} : memref<144x128xbf16, #tpu.memory_space<vmem>>, vector<16x128xbf16>,
    %73 = arith.index_cast %0 : i32 to index
    %c0_32 = arith.constant 0 : index
    %c34 = arith.constant 34 : index
    %74 = vector.load %arg9[%73, %c0_32, %c34] : memref<2x16x256xbf16, #tpu.memory_space<vmem>>, vector<1x16x128xbf16>
    %75 = vector.shape_cast %74 : vector<1x16x128xbf16> to vector<16x128xbf16>
    %cst_33 = arith.constant 0.000000e+00 : bf16
    %76 = vector.broadcast %cst_33 : bf16 to vector<16x128xbf16>
    %77 = vector.shape_cast %20 : vector<1x128xi1> to vector<1x128xi1>
    %78 = vector.broadcast %77 : vector<1x128xi1> to vector<16x128xi1>
    %79 = arith.select %78, %75, %76 : vector<16x128xi1>, vector<16x128xbf16>
    %c128 = arith.constant 128 : index
    %c0_34 = arith.constant 0 : index
    %80 = vector.load %arg10[%c128, %c0_34] : memref<144x128xbf16, #tpu.memory_space<vmem>>, vector<16x128xbf16>
    tpu.vector_store %arg10[%c128, %c0_34], %79 {strides = array<i32>} : memref<144x128xbf16, #tpu.memory_space<vmem>>, vector<16x128xbf16>,
    %c0_35 = arith.constant 0 : index
    %c0_36 = arith.constant 0 : index
    %81 = vector.load %arg3[%c0_35, %c0_36] : memref<16x144xbf16, #tpu.memory_space<vmem>>, vector<16x144xbf16>
    %c0_37 = arith.constant 0 : index
    %c0_38 = arith.constant 0 : index
    %82 = vector.load %arg10[%c0_37, %c0_38] : memref<144x128xbf16, #tpu.memory_space<vmem>>, vector<144x128xbf16>
    %cst_39 = arith.constant dense<0.000000e+00> : vector<16x128xf32>
    %83 = tpu.matmul %81, %82, %cst_39 {dimension_numbers = #tpu.dot_dimension_numbers<[1], [0], [0], [1], [0, 0, 1, 1], [], []>} : vector<16x144xbf16>, vector<144x128xbf16>, vector<16x128xf32> -> vector<16x128xf32>
    %c0_40 = arith.constant 0 : index
    %c0_41 = arith.constant 0 : index
    %84 = vector.load %arg4[%c0_40, %c0_41] : memref<16x1xf32, #tpu.memory_space<vmem>>, vector<16x1xf32>
    %85 = vector.broadcast %84 : vector<16x1xf32> to vector<16x128xf32>
    %86 = arith.addf %83, %85 : vector<16x128xf32>
    %87 = arith.negf %86 : vector<16x128xf32>
    %88 = math.exp %87 : vector<16x128xf32>
    %cst_42 = arith.constant 1.000000e+00 : f32
    %89 = vector.broadcast %cst_42 : f32 to vector<16x128xf32>
    %90 = arith.addf %89, %88 : vector<16x128xf32>
    %91 = arith.divf %89, %90 : vector<16x128xf32>
    %92 = arith.truncf %91 : vector<16x128xf32> to vector<16x128xbf16>
    %c0_43 = arith.constant 0 : index
    %c0_44 = arith.constant 0 : index
    %c0_45 = arith.constant 0 : index
    %93 = vector.load %arg7[%c0_43, %c0_44, %c0_45] : memref<1x16x128xbf16, #tpu.memory_space<vmem>>, vector<1x16x128xbf16>
    %94 = vector.shape_cast %93 : vector<1x16x128xbf16> to vector<16x128xbf16>
    %95 = vector.shape_cast %92 : vector<16x128xbf16> to vector<1x16x128xbf16>
    tpu.vector_store %arg7[%c0_43, %c0_44, %c0_45], %95 {strides = array<i32>} : memref<1x16x128xbf16, #tpu.memory_space<vmem>>, vector<1x16x128xbf16>,
    %c0_46 = arith.constant 0 : index
    %c0_47 = arith.constant 0 : index
    %c0_48 = arith.constant 0 : index
    %96 = vector.load %arg6[%c0_46, %c0_47, %c0_48] : memref<1x16x128xbf16, #tpu.memory_space<vmem>>, vector<1x16x128xbf16>
    %97 = vector.shape_cast %96 : vector<1x16x128xbf16> to vector<16x128xbf16>
    %98 = arith.extf %97 : vector<16x128xbf16> to vector<16x128xf32>
    %99 = arith.subf %91, %98 : vector<16x128xf32>
    %100 = arith.mulf %99, %99 : vector<16x128xf32>
    %c0_49 = arith.constant 0 : index
    %c0_50 = arith.constant 0 : index
    %c0_51 = arith.constant 0 : index
    %101 = vector.load %arg8[%c0_49, %c0_50, %c0_51] : memref<1x16x128xf32, #tpu.memory_space<vmem>>, vector<1x16x128xf32>
    %102 = vector.shape_cast %101 : vector<1x16x128xf32> to vector<16x128xf32>
    %103 = arith.addf %102, %100 : vector<16x128xf32>
    %c0_52 = arith.constant 0 : index
    %c0_53 = arith.constant 0 : index
    %c0_54 = arith.constant 0 : index
    %104 = vector.load %arg8[%c0_52, %c0_53, %c0_54] : memref<1x16x128xf32, #tpu.memory_space<vmem>>, vector<1x16x128xf32>
    %105 = vector.shape_cast %104 : vector<1x16x128xf32> to vector<16x128xf32>
    %106 = vector.shape_cast %103 : vector<16x128xf32> to vector<1x16x128xf32>
    tpu.vector_store %arg8[%c0_52, %c0_53, %c0_54], %106 {strides = array<i32>} : memref<1x16x128xf32, #tpu.memory_space<vmem>>, vector<1x16x128xf32>,
    return
  }
  func.func @transform_1(%arg0: i32, %arg1: i32) -> (i32, i32) {
    %c0_i32 = arith.constant 0 : i32
    %c0_i32_0 = arith.constant 0 : i32
    %c0_i32_1 = arith.constant 0 : i32
    return %c0_i32, %c0_i32_0 : i32, i32
  }
  func.func @transform_2(%arg0: i32, %arg1: i32) -> (i32, i32) {
    %c0_i32 = arith.constant 0 : i32
    %c0_i32_0 = arith.constant 0 : i32
    %c0_i32_1 = arith.constant 0 : i32
    return %c0_i32, %c0_i32_0 : i32, i32
  }
  func.func @transform_3(%arg0: i32, %arg1: i32) -> (i32, i32) {
    %c0_i32 = arith.constant 0 : i32
    %c0_i32_0 = arith.constant 0 : i32
    %c0_i32_1 = arith.constant 0 : i32
    return %c0_i32, %c0_i32_0 : i32, i32
  }
  func.func @transform_4(%arg0: i32, %arg1: i32) -> (i32, i32, i32) {
    %c0_i32 = arith.constant 0 : i32
    %c0_i32_0 = arith.constant 0 : i32
    return %arg0, %c0_i32, %arg1 : i32, i32, i32
  }
  func.func @transform_5(%arg0: i32, %arg1: i32) -> (i32, i32, i32) {
    %c0_i32 = arith.constant 0 : i32
    %c0_i32_0 = arith.constant 0 : i32
    return %arg0, %c0_i32, %arg1 : i32, i32, i32
  }
  func.func @transform_6(%arg0: i32, %arg1: i32) -> (i32, i32, i32) {
    %c0_i32 = arith.constant 0 : i32
    %c0_i32_0 = arith.constant 0 : i32
    %c0_i32_1 = arith.constant 0 : i32
    return %arg0, %c0_i32, %c0_i32_0 : i32, i32, i32
  }
}

</mosaic_0001>

<llo_original>
// kernel: model_with_loss_forward.1
$region0: #{model_with_loss_forward.1}
  #allocation0 [shape = 'u32[]', space=smem, size = 0x4, offset = 0x4, fixed_abs, tag = 'smem constant byte address 0x4 - core index']
  #allocation1 [shape = 'u32[144,128]{1,0:T(1,128)}', space=vmem, size = 0x12000, scoped, tag = 'internal scratch']
  #allocation2 [shape = 'bf16[2,16,256]{2,1,0:T(16,128)(2,1)}', space=vmem, size = 0x4000, scoped, tag = 'scratch operand']
  #allocation3 [shape = 'bf16[144,128]{1,0:T(16,128)(2,1)}', space=vmem, size = 0x9000, scoped, tag = 'scratch operand']
  #allocation4 [shape = 's32[2]{0}', space=sflag, size = 0x8, scoped, tag = 'scratch operand']
  #allocation7 [shape = 's32[]', space=sflag, size = 0x4, offset = 0, fixed_abs, tag = 'sflag constant byte address 0x0 - dummy sync flag']
  #allocation8 [shape = 's32[]', space=sflag, size = 0x4, offset = 0, fixed_abs, tag = 'sflag constant byte address 0x0 - dummy sync flag']
  %s0 = inlined_call_operand.vmem [shape: bf16[2,16,384], index: 0, kind: input, shape index: {}]
  %s1 = inlined_call_operand.vmem [shape: bf16[16,144], index: 1, kind: input, shape index: {}]
  %s2 = inlined_call_operand.vmem [shape: f32[16,1], index: 2, kind: input, shape index: {}]
  %s3 = inlined_call_operand.vmem [shape: s32[1,128], index: 3, kind: input, shape index: {}]
  %s4 = inlined_call_operand.vmem [shape: bf16[2,16,256], index: 4, kind: input, shape index: {}]
  %s5 = inlined_call_operand.vmem [shape: bf16[2,16,256], index: 5, kind: output, shape index: {0}]
  %s6 = inlined_call_operand.vmem [shape: f32[2,16,128], index: 6, kind: output, shape index: {1}]
  %7 = xla_tuple %s5, %s6
  %s8 = sld [smem:[#allocation0]]
  $region217: #{model_with_loss_forward.1} parent=0
    _
  %s10 = ssub.s32 1, %s8
  %s11 = scalar_select 0, %s10, %s8
  $region1: #{model_with_loss_forward.1} parent=0
    #allocation5 [shape = 'u8[8192]{0}', space=vmem, size = 0x2000, scoped, tag = 'input window, operand 4']
    #allocation6 [shape = 'u8[8192]{0}', space=vmem, size = 0x2000, scoped, tag = 'output window, operand 0']
    loop: start=0, step=1, limit=6
    $region2: #{model_with_loss_forward.1} parent=1 // loop_pre_header
      _
    $region3: #{model_with_loss_forward.1} parent=1 // loop_header
      %s13 = sphi 0, %s17
      %p14 = scmp.ge.s32.totalorder %s13, 6
      %s20 = sphi 0, %s32
      %s21 = sphi 0, %s28
      %s22 = sphi 0, %s20
      %s23 = sphi 0, %s21
      %s24 = sphi 0, %s22
      %s25 = sphi 0, %s23
      %s33 = sphi 0, %s33
      %s35 = sphi 0, %s33
      %s36 = sphi 0, %s35
      %s50 = sphi 0, %s36
      %s54 = sphi 0, %s54
      %s56 = sphi 0, %s54
      %s57 = sphi 0, %s56
      %s71 = sphi 0, %s57
      %s75 = sphi 0, %s75
      %s77 = sphi 0, %s75
      %s78 = sphi 0, %s77
      %s92 = sphi 0, %s78
      %s100 = sphi 0, %s102
      %s103 = sphi 0, %s100
      %s104 = sphi 0, %s103
      %s120 = sphi 0, %s104
      %s128 = sphi 0, %s130
      %s131 = sphi 0, %s128
      %s132 = sphi 0, %s131
      %s148 = sphi 0, %s132
      %s154 = sphi 0, %s156
      %s157 = sphi 0, %s154
      %s158 = sphi 0, %s157
      %s174 = sphi 0, %s158
    $region4: #{model_with_loss_forward.1} parent=1 // loop_header_branch
      %16 = sbr.rel (%p14) target = $region8
    $region5: #{model_with_loss_forward.1} parent=1 // loop_body
      %s18 = ssub.s32 %s13, 1
      %s19 = ssub.s32 %s13, 2
      %s26 = sadd.s32 1, %s21
      %p27 = scmp.ge.s32.totalorder %s26, 2
      %s28 = scalar_select %p27, 0, %s26
      %s29 = sadd.s32 1, %s20
      %s30 = scalar_select %p27, %s29, %s20
      %p31 = scmp.ge.s32.totalorder %s30, 2
      %s32 = scalar_select %p31, 0, %s30
      %s34 = sadd.s32 %s33, 1
      %p37 = scmp.eq.s32.totalorder %s13, 3
      %p38 = scmp.ne.s32.totalorder %s33, %s35
      %p39 = scmp.eq.s32.totalorder %s13, 0
      %p40 = por %p38, %p39
      %p41 = scmp.ne.s32.totalorder %s33, %s35
      %p42 = scmp.eq.s32.totalorder %s18, 3
      %p43 = por %p41, %p42
      %p44 = scmp.ne.s32.totalorder %s35, %s36
      %p45 = scmp.eq.s32.totalorder %s18, 0
      %p46 = por %p44, %p45
      %p47 = scmp.ne.s32.totalorder %s35, %s36
      %p48 = scmp.eq.s32.totalorder %s19, 3
      %p49 = por %p47, %p48
      %p51 = scmp.ne.s32.totalorder %s36, %s50
      %p52 = scmp.eq.s32.totalorder %s19, 0
      %p53 = por %p51, %p52
      %s55 = sadd.s32 %s54, 1
      %p58 = scmp.eq.s32.totalorder %s13, 3
      %p59 = scmp.ne.s32.totalorder %s54, %s56
      %p60 = scmp.eq.s32.totalorder %s13, 0
      %p61 = por %p59, %p60
      %p62 = scmp.ne.s32.totalorder %s54, %s56
      %p63 = scmp.eq.s32.totalorder %s18, 3
      %p64 = por %p62, %p63
      %p65 = scmp.ne.s32.totalorder %s56, %s57
      %p66 = scmp.eq.s32.totalorder %s18, 0
      %p67 = por %p65, %p66
      %p68 = scmp.ne.s32.totalorder %s56, %s57
      %p69 = scmp.eq.s32.totalorder %s19, 3
      %p70 = por %p68, %p69
      %p72 = scmp.ne.s32.totalorder %s57, %s71
      %p73 = scmp.eq.s32.totalorder %s19, 0
      %p74 = por %p72, %p73
      %s76 = sadd.s32 %s75, 1
      %p79 = scmp.eq.s32.totalorder %s13, 3
      %p80 = scmp.ne.s32.totalorder %s75, %s77
      %p81 = scmp.eq.s32.totalorder %s13, 0
      %p82 = por %p80, %p81
      %p83 = scmp.ne.s32.totalorder %s75, %s77
      %p84 = scmp.eq.s32.totalorder %s18, 3
      %p85 = por %p83, %p84
      %p86 = scmp.ne.s32.totalorder %s77, %s78
      %p87 = scmp.eq.s32.totalorder %s18, 0
      %p88 = por %p86, %p87
      %p89 = scmp.ne.s32.totalorder %s77, %s78
      %p90 = scmp.eq.s32.totalorder %s19, 3
      %p91 = por %p89, %p90
      %p93 = scmp.ne.s32.totalorder %s78, %s92
      %p94 = scmp.eq.s32.totalorder %s19, 0
      %p95 = por %p93, %p94
      %s96 = ssub.s32 %s20, %s32
      %s97 = ssub.s32 %s21, %s28
      %s98 = sor.u32 %s96, %s97
      %p99 = scmp.eq.s32.totalorder %s98, 0
      %s101 = sadd.s32 %s100, 1
      %s102 = scalar_select %p99, %s100, %s101
      %p105 = pneg %p99
      %p106 = scmp.eq.s32.totalorder %s13, 3
      %p107 = por %p105, %p106
      %p108 = scmp.ne.s32.totalorder %s100, %s103
      %p109 = scmp.eq.s32.totalorder %s13, 0
      %p110 = por %p108, %p109
      %p111 = scmp.ne.s32.totalorder %s100, %s103
      %p112 = scmp.eq.s32.totalorder %s18, 3
      %p113 = por %p111, %p112
      %p114 = scmp.ne.s32.totalorder %s103, %s104
      %p115 = scmp.eq.s32.totalorder %s18, 0
      %p116 = por %p114, %p115
      %p117 = scmp.ne.s32.totalorder %s103, %s104
      %p118 = scmp.eq.s32.totalorder %s19, 3
      %p119 = por %p117, %p118
      %p121 = scmp.ne.s32.totalorder %s104, %s120
      %p122 = scmp.eq.s32.totalorder %s19, 0
      %p123 = por %p121, %p122
      %s124 = ssub.s32 %s20, %s32
      %s125 = ssub.s32 %s21, %s28
      %s126 = sor.u32 %s124, %s125
      %p127 = scmp.eq.s32.totalorder %s126, 0
      %s129 = sadd.s32 %s128, 1
      %s130 = scalar_select %p127, %s128, %s129
      %p133 = pneg %p127
      %p134 = scmp.eq.s32.totalorder %s13, 3
      %p135 = por %p133, %p134
      %p136 = scmp.ne.s32.totalorder %s128, %s131
      %p137 = scmp.eq.s32.totalorder %s13, 0
      %p138 = por %p136, %p137
      %p139 = scmp.ne.s32.totalorder %s128, %s131
      %p140 = scmp.eq.s32.totalorder %s18, 3
      %p141 = por %p139, %p140
      %p142 = scmp.ne.s32.totalorder %s131, %s132
      %p143 = scmp.eq.s32.totalorder %s18, 0
      %p144 = por %p142, %p143
      %p145 = scmp.ne.s32.totalorder %s131, %s132
      %p146 = scmp.eq.s32.totalorder %s19, 3
      %p147 = por %p145, %p146
      %p149 = scmp.ne.s32.totalorder %s132, %s148
      %p150 = scmp.eq.s32.totalorder %s19, 0
      %p151 = por %p149, %p150
      %s152 = ssub.s32 %s20, %s32
      %p153 = scmp.eq.s32.totalorder %s152, 0
      %s155 = sadd.s32 %s154, 1
      %s156 = scalar_select %p153, %s154, %s155
      %p159 = pneg %p153
      %p160 = scmp.eq.s32.totalorder %s13, 3
      %p161 = por %p159, %p160
      %p162 = scmp.ne.s32.totalorder %s154, %s157
      %p163 = scmp.eq.s32.totalorder %s13, 0
      %p164 = por %p162, %p163
      %p165 = scmp.ne.s32.totalorder %s154, %s157
      %p166 = scmp.eq.s32.totalorder %s18, 3
      %p167 = por %p165, %p166
      %p168 = scmp.ne.s32.totalorder %s157, %s158
      %p169 = scmp.eq.s32.totalorder %s18, 0
      %p170 = por %p168, %p169
      %p171 = scmp.ne.s32.totalorder %s157, %s158
      %p172 = scmp.eq.s32.totalorder %s19, 3
      %p173 = por %p171, %p172
      %p175 = scmp.ne.s32.totalorder %s158, %s174
      %p176 = scmp.eq.s32.totalorder %s19, 0
      %p177 = por %p175, %p176
      %p178 = scmp.le.s32.totalorder 1, %s13
      %p179 = scmp.lt.s32.totalorder %s13, 5
      %p180 = pnand %p178, %p179
      %p181 = pneg %p180
      // Predicated region
      $region9: #{model_with_loss_forward.1} parent=5 // pred_check
        _
      $region10: #{model_with_loss_forward.1} parent=5 // pred_check_branch
        %183 = sbr.rel (%p180) target = $region12
      $region11: #{model_with_loss_forward.1} parent=5 // pred_region
        %s184 = ssub.s32 %s13, 1
        // Predicated region
        $region13: #{model_with_loss_forward.1} parent=11 // pred_check
          %p185 = pneg %p46
        $region14: #{model_with_loss_forward.1} parent=11 // pred_check_branch
          %187 = sbr.rel (%p185) target = $region16
        $region15: #{model_with_loss_forward.1} parent=11 // pred_region
          _
        $region16: #{model_with_loss_forward.1} parent=11 // pred_fallthru
          _
        // Predicated region
        $region17: #{model_with_loss_forward.1} parent=11 // pred_check
          %p188 = pneg %p67
        $region18: #{model_with_loss_forward.1} parent=11 // pred_check_branch
          %190 = sbr.rel (%p188) target = $region20
        $region19: #{model_with_loss_forward.1} parent=11 // pred_region
          _
        $region20: #{model_with_loss_forward.1} parent=11 // pred_fallthru
          _
        // Predicated region
        $region21: #{model_with_loss_forward.1} parent=11 // pred_check
          %p191 = pneg %p88
        $region22: #{model_with_loss_forward.1} parent=11 // pred_check_branch
          %193 = sbr.rel (%p191) target = $region24
        $region23: #{model_with_loss_forward.1} parent=11 // pred_region
          _
        $region24: #{model_with_loss_forward.1} parent=11 // pred_fallthru
          _
      $region12: #{model_with_loss_forward.1} parent=5 // pred_fallthru
        _
      %p194 = scmp.lt.s32.totalorder %s13, 4
      // Predicated region
      $region25: #{model_with_loss_forward.1} parent=5 // pred_check
        %p195 = pneg %p194
      $region26: #{model_with_loss_forward.1} parent=5 // pred_check_branch
        %197 = sbr.rel (%p195) target = $region28
      $region27: #{model_with_loss_forward.1} parent=5 // pred_region
        // Predicated region
        $region29: #{model_with_loss_forward.1} parent=27 // pred_check
          %p198 = pneg %p110
        $region30: #{model_with_loss_forward.1} parent=27 // pred_check_branch
          %200 = sbr.rel (%p198) target = $region32
        $region31: #{model_with_loss_forward.1} parent=27 // pred_region
          %s201 = sand.u32 %s100, 1
          %s202 = sand.u32 %s100, 1
          %s203 = smul.addr %s202, 8
          %s204 = scalar_lea.vmem [#allocation5], %s203
          %s205 = smul.addr %s20, 4
          %s206 = sadd.s32 %s21, %s205
          %s207 = smul.addr %s206, 4
          %s208 = scalar_lea.vmem %s4, %s207
          // Predicated region
          $region33: #{model_with_loss_forward.1} parent=31 // pred_check
            _
          $region34: #{model_with_loss_forward.1} parent=31 // pred_check_branch
            %210 = sbr.rel (0) target = $region36
          $region35: #{model_with_loss_forward.1} parent=31 // pred_region
            // Predicated region
            $region37: #{model_with_loss_forward.1} parent=35 // pred_check
              _
            $region38: #{model_with_loss_forward.1} parent=35 // pred_check_branch
              %212 = sbr.rel target = $region40
            $region39: #{model_with_loss_forward.1} parent=35 // pred_region
              // Predicated region
              $region52: #{model_with_loss_forward.1} parent=39 // pred_check
                _
              $region53: #{model_with_loss_forward.1} parent=39 // pred_check_branch
                %229 = sbr.rel (0) target = $region55
              $region54: #{model_with_loss_forward.1} parent=39 // pred_region
                loop: start=0, step=1, limit=1
                $region56: #{model_with_loss_forward.1} parent=54 // loop_pre_header
                  _
                $region57: #{model_with_loss_forward.1} parent=54 // loop_header
                  %s231 = sphi 0, %s235
                  %p232 = scmp.ge.s32.totalorder %s231, 1
                  %s236 = sphi %s208, %s208
                  %s237 = sphi %s204, %s204
                $region58: #{model_with_loss_forward.1} parent=54 // loop_header_branch
                  %234 = sbr.rel (%p232) target = $region62
                $region59: #{model_with_loss_forward.1} parent=54 // loop_body
                  _
                $region60: #{model_with_loss_forward.1} parent=54 // loop_footer
                  %s235 = sadd.s32 1, %s231
                $region61: #{model_with_loss_forward.1} parent=54 // loop_footer_branch
                  %230 = sbr.rel target = $region57
                $region62: #{model_with_loss_forward.1} parent=54 // loop_exit
                  _
                loop: start=0, step=1, limit=1
                $region63: #{model_with_loss_forward.1} parent=54 // loop_pre_header
                  _
                $region64: #{model_with_loss_forward.1} parent=54 // loop_header
                  %s240 = sphi 0, %s244
                  %p241 = scmp.ge.s32.totalorder %s240, 1
                  %s245 = sphi %s208, %s208
                  %s246 = sphi %s204, %s204
                $region65: #{model_with_loss_forward.1} parent=54 // loop_header_branch
                  %243 = sbr.rel (%p241) target = $region69
                $region66: #{model_with_loss_forward.1} parent=54 // loop_body
                  %v247 = vld [vmem:[%s245] sm:$0xf]
                  %248 = vst [vmem:[%s246] sm:$0xf] %v247
                  %v249 = vld [vmem:[%s245 + $0x8] sm:$0xf]
                  %250 = vst [vmem:[%s246 + $0x4] sm:$0xf] %v249
                $region67: #{model_with_loss_forward.1} parent=54 // loop_footer
                  %s244 = sadd.s32 1, %s240
                $region68: #{model_with_loss_forward.1} parent=54 // loop_footer_branch
                  %239 = sbr.rel target = $region64
                $region69: #{model_with_loss_forward.1} parent=54 // loop_exit
                  _
              $region55: #{model_with_loss_forward.1} parent=39 // pred_fallthru
                _
            $region40: #{model_with_loss_forward.1} parent=35 // pred_fallthru
              _
            // Predicated region
            $region41: #{model_with_loss_forward.1} parent=35 // pred_check
              _
            $region42: #{model_with_loss_forward.1} parent=35 // pred_check_branch
              %214 = sbr.rel (0) target = $region44
            $region43: #{model_with_loss_forward.1} parent=35 // pred_region
              loop: start=0, step=1, limit=1
              $region45: #{model_with_loss_forward.1} parent=43 // loop_pre_header
                _
              $region46: #{model_with_loss_forward.1} parent=43 // loop_header
                %s217 = sphi 0, %s221
                %p218 = scmp.ge.s32.totalorder %s217, 1
                %s222 = sphi %s208, %s208
                %s223 = sphi %s204, %s204
              $region47: #{model_with_loss_forward.1} parent=43 // loop_header_branch
                %220 = sbr.rel (%p218) target = $region51
              $region48: #{model_with_loss_forward.1} parent=43 // loop_body
                %v224 = vld [vmem:[%s222] sm:$0xf]
                %225 = vst [vmem:[%s223] sm:$0xf] %v224
                %v226 = vld [vmem:[%s222 + $0x8] sm:$0xf]
                %227 = vst [vmem:[%s223 + $0x4] sm:$0xf] %v226
              $region49: #{model_with_loss_forward.1} parent=43 // loop_footer
                %s221 = sadd.s32 1, %s217
              $region50: #{model_with_loss_forward.1} parent=43 // loop_footer_branch
                %216 = sbr.rel target = $region46
              $region51: #{model_with_loss_forward.1} parent=43 // loop_exit
                _
            $region44: #{model_with_loss_forward.1} parent=35 // pred_fallthru
              _
          $region36: #{model_with_loss_forward.1} parent=31 // pred_fallthru
            _
          %251 = vnop
        $region32: #{model_with_loss_forward.1} parent=27 // pred_fallthru
          _
      $region28: #{model_with_loss_forward.1} parent=5 // pred_fallthru
        _
      %p252 = scmp.le.s32.totalorder 1, %s13
      %p253 = scmp.lt.s32.totalorder %s13, 5
      %p254 = pnand %p252, %p253
      %p255 = pneg %p254
      // Predicated region
      $region70: #{model_with_loss_forward.1} parent=5 // pred_check
        _
      $region71: #{model_with_loss_forward.1} parent=5 // pred_check_branch
        %257 = sbr.rel (%p254) target = $region73
      $region72: #{model_with_loss_forward.1} parent=5 // pred_region
        %s258 = ssub.s32 %s13, 1
        %s259 = sand.u32 %s103, 1
        %s260 = sand.u32 %s103, 1
        %s261 = smul.addr %s260, 8
        %s262 = scalar_lea.vmem [#allocation5], %s261
        // Predicated region
        $region74: #{model_with_loss_forward.1} parent=72 // pred_check
          %p263 = pneg %p116
        $region75: #{model_with_loss_forward.1} parent=72 // pred_check_branch
          %265 = sbr.rel (%p263) target = $region77
        $region76: #{model_with_loss_forward.1} parent=72 // pred_region
          _
        $region77: #{model_with_loss_forward.1} parent=72 // pred_fallthru
          _
        %p266 = pneg %p46
        %p267 = pneg %p43
        %p268 = pneg %p67
        %p269 = pneg %p64
        %p270 = pneg %p88
        %p271 = pneg %p85
        %s272 = sand.u32 %s103, 1
        %s273 = sand.u32 %s103, 1
        %s274 = smul.addr %s273, 8
        %s275 = scalar_lea.vmem [#allocation5], %s274
        %p276 = pneg %p116
        %p277 = pneg %p113
        %p278 = pneg %p144
        %p279 = pneg %p141
        %s280 = sand.u32 %s131, 1
        %s281 = sand.u32 %s131, 1
        %s282 = smul.addr %s281, 8
        %s283 = scalar_lea.vmem [#allocation6], %s282
        %p284 = pneg %p170
        %p285 = pneg %p167
        %p286 = scmp.lt.s32.totalorder %s22, 1
        %s287 = scalar_select %p286, %s22, 1
        %s288 = smul.addr %s287, 2
        %s289 = smul.addr %s288, 8
        %s290 = scalar_lea.vmem %s6, %s289
        %p291 = scmp.lt.s32.totalorder %s22, 1
        %s292 = scalar_select %p291, %s22, 1
        %s293 = smul.addr %s292, 2
        %s294 = smul.addr %s293, 8
        %s295 = scalar_lea.vmem %s6, %s294
        %p299 = scmp.lt.s32.totalorder %s23, 0
        %s300 = ssub.s32 0, %s23
        %s301 = scalar_select %p299, %s300, %s23
        %s302 = sand.u32 %s301, 1
        %s303 = ssub.s32 0, %s302
        %s304 = scalar_select %p299, %s303, %s302
        %p305 = scmp.eq.s32.totalorder %s23, 0
        // Predicated region
        $region78: #{model_with_loss_forward.1} parent=72 // pred_check
          %p306 = pneg %p305
        $region79: #{model_with_loss_forward.1} parent=72 // pred_check_branch
          %308 = sbr.rel (%p306) target = $region81
        $region80: #{model_with_loss_forward.1} parent=72 // pred_region
          %s309 = smul.u32 %s23, 128
          %s310 = sshra.s32 %s309, 7
          %s311 = sand.u32 %s309, 127
          %s312 = smul.u32 %s22, 6
          %s313 = sadd.s32 %s310, %s312
          %s314 = smul.addr %s313, 4
          %s315 = scalar_lea.vmem %s0, %s314
          %s316 = smul.u32 %s304, 2
          %s317 = smul.addr %s316, 8
          %s318 = scalar_lea.vmem [#allocation2], %s317
          %s319 = scalar_lea.sflag [#allocation4], %s304
          %p321 = scmp.lt.u32.totalorder 4, 8
          %p322 = pneg %p321
          // Predicated region
          $region82: #{model_with_loss_forward.1} parent=80 // pred_check
            _
          $region83: #{model_with_loss_forward.1} parent=80 // pred_check_branch
            %324 = sbr.rel (%p321) target = $region85
          $region84: #{model_with_loss_forward.1} parent=80 // pred_region
            %s345 = sand.u32 4, 7
            %p346 = scmp.eq.s32.totalorder %s345, 0
            %p347 = pneg %p346
            // Predicated region
            $region97: #{model_with_loss_forward.1} parent=84 // pred_check
              _
            $region98: #{model_with_loss_forward.1} parent=84 // pred_check_branch
              %349 = sbr.rel (%p346) target = $region100
            $region99: #{model_with_loss_forward.1} parent=84 // pred_region
              %s350 = sand.u32 4, 7
              %s351 = ssub.s32 4, %s350
              %s352 = scalar_lea.vmem %s315, %s351
              %s353 = ssub.s32 4, %s350
              %s354 = scalar_lea.vmem %s318, %s353 [#allocation2]
              loop: start=0, step=1, limit=1
              $region101: #{model_with_loss_forward.1} parent=99 // loop_pre_header
                _
              $region102: #{model_with_loss_forward.1} parent=99 // loop_header
                %s356 = sphi 0, %s360
                %p357 = scmp.ge.s32.totalorder %s356, 1
                %s361 = sphi %s315, %s315
                %s362 = sphi %s318, %s318
              $region103: #{model_with_loss_forward.1} parent=99 // loop_header_branch
                %359 = sbr.rel (%p357) target = $region107
              $region104: #{model_with_loss_forward.1} parent=99 // loop_body
                _
              $region105: #{model_with_loss_forward.1} parent=99 // loop_footer
                %s360 = sadd.s32 1, %s356
              $region106: #{model_with_loss_forward.1} parent=99 // loop_footer_branch
                %355 = sbr.rel target = $region102
              $region107: #{model_with_loss_forward.1} parent=99 // loop_exit
                _
              %s363 = sshllo.u32 0, %s350
              loop: start=0, step=1, limit=1
              $region108: #{model_with_loss_forward.1} parent=99 // loop_pre_header
                _
              $region109: #{model_with_loss_forward.1} parent=99 // loop_header
                %s365 = sphi 0, %s369
                %p366 = scmp.ge.s32.totalorder %s365, 1
                %s370 = sphi %s352, %s352
                %s371 = sphi %s354, %s354
              $region110: #{model_with_loss_forward.1} parent=99 // loop_header_branch
                %368 = sbr.rel (%p366) target = $region114
              $region111: #{model_with_loss_forward.1} parent=99 // loop_body
                %v372 = vld [vmem:[%s370] sm:%s363]
                %373 = vst [vmem:[%s371] sm:%s363] %v372
                %v374 = vld [vmem:[%s370 + $0xc] sm:%s363]
                %375 = vst [vmem:[%s371 + $0x4] sm:%s363] %v374
                %v376 = vld [vmem:[%s370 + $0x4] sm:%s363]
                %377 = vst [vmem:[%s371 + $0x8] sm:%s363] %v376
                %v378 = vld [vmem:[%s370 + $0x10] sm:%s363]
                %379 = vst [vmem:[%s371 + $0xc] sm:%s363] %v378
              $region112: #{model_with_loss_forward.1} parent=99 // loop_footer
                %s369 = sadd.s32 1, %s365
              $region113: #{model_with_loss_forward.1} parent=99 // loop_footer_branch
                %364 = sbr.rel target = $region109
              $region114: #{model_with_loss_forward.1} parent=99 // loop_exit
                _
            $region100: #{model_with_loss_forward.1} parent=84 // pred_fallthru
              _
          $region85: #{model_with_loss_forward.1} parent=80 // pred_fallthru
            _
          // Predicated region
          $region86: #{model_with_loss_forward.1} parent=80 // pred_check
            %p325 = pneg %p321
          $region87: #{model_with_loss_forward.1} parent=80 // pred_check_branch
            %327 = sbr.rel (%p325) target = $region89
          $region88: #{model_with_loss_forward.1} parent=80 // pred_region
            %s328 = sshllo.u32 0, 4
            loop: start=0, step=1, limit=1
            $region90: #{model_with_loss_forward.1} parent=88 // loop_pre_header
              _
            $region91: #{model_with_loss_forward.1} parent=88 // loop_header
              %s330 = sphi 0, %s334
              %p331 = scmp.ge.s32.totalorder %s330, 1
              %s335 = sphi %s315, %s315
              %s336 = sphi %s318, %s318
            $region92: #{model_with_loss_forward.1} parent=88 // loop_header_branch
              %333 = sbr.rel (%p331) target = $region96
            $region93: #{model_with_loss_forward.1} parent=88 // loop_body
              %v337 = vld [vmem:[%s335] sm:%s328]
              %338 = vst [vmem:[%s336] sm:%s328] %v337
              %v339 = vld [vmem:[%s335 + $0xc] sm:%s328]
              %340 = vst [vmem:[%s336 + $0x4] sm:%s328] %v339
              %v341 = vld [vmem:[%s335 + $0x4] sm:%s328]
              %342 = vst [vmem:[%s336 + $0x8] sm:%s328] %v341
              %v343 = vld [vmem:[%s335 + $0x10] sm:%s328]
              %344 = vst [vmem:[%s336 + $0xc] sm:%s328] %v343
            $region94: #{model_with_loss_forward.1} parent=88 // loop_footer
              %s334 = sadd.s32 1, %s330
            $region95: #{model_with_loss_forward.1} parent=88 // loop_footer_branch
              %329 = sbr.rel target = $region91
            $region96: #{model_with_loss_forward.1} parent=88 // loop_exit
              _
          $region89: #{model_with_loss_forward.1} parent=80 // pred_fallthru
            _
          // Predicated region
          $region115: #{model_with_loss_forward.1} parent=80 // pred_check
            _
          $region116: #{model_with_loss_forward.1} parent=80 // pred_check_branch
            %382 = sbr.rel (0) target = $region118
          $region117: #{model_with_loss_forward.1} parent=80 // pred_region
            %383 = vsyncadd %s319, 256
          $region118: #{model_with_loss_forward.1} parent=80 // pred_fallthru
            _
          %384 = vst [vmem:[%s295] sm:$0xff] 0.0
          %385 = vst [vmem:[%s295 + $0x8] sm:$0xff] 0.0
        $region81: #{model_with_loss_forward.1} parent=72 // pred_fallthru
          _
        %s386 = smul.u32 %s23, 128
        %s387 = smul.u32 %s304, 2
        %s388 = smul.addr %s387, 8
        %s389 = scalar_lea.vmem [#allocation2], %s388
        %s390 = scalar_lea.sflag [#allocation4], %s304
        %s391 = smul.u32 4, 2
        %s392 = smul.u32 %s391, 2
        %s393 = sshll.u32 %s392, 4
        %394 = dma.done %s390, %s393
        %s395 = sadd.s32 %s23, 1
        %p396 = scmp.lt.s32.totalorder %s395, 2
        // Predicated region
        $region119: #{model_with_loss_forward.1} parent=72 // pred_check
          %p397 = pneg %p396
        $region120: #{model_with_loss_forward.1} parent=72 // pred_check_branch
          %399 = sbr.rel (%p397) target = $region122
        $region121: #{model_with_loss_forward.1} parent=72 // pred_region
          %p400 = scmp.lt.s32.totalorder %s395, 1
          %s401 = scalar_select %p400, %s395, 1
          %s402 = smul.u32 %s401, 128
          %s403 = ssub.s32 1, %s304
          %s404 = sshra.s32 %s402, 7
          %s405 = sand.u32 %s402, 127
          %s406 = smul.u32 %s22, 6
          %s407 = sadd.s32 %s404, %s406
          %s408 = smul.addr %s407, 4
          %s409 = scalar_lea.vmem %s0, %s408
          %s410 = smul.u32 %s403, 2
          %s411 = smul.addr %s410, 8
          %s412 = scalar_lea.vmem [#allocation2], %s411
          %s413 = scalar_lea.sflag [#allocation4], %s403
          %p415 = scmp.lt.u32.totalorder 4, 8
          %p416 = pneg %p415
          // Predicated region
          $region123: #{model_with_loss_forward.1} parent=121 // pred_check
            _
          $region124: #{model_with_loss_forward.1} parent=121 // pred_check_branch
            %418 = sbr.rel (%p415) target = $region126
          $region125: #{model_with_loss_forward.1} parent=121 // pred_region
            %s439 = sand.u32 4, 7
            %p440 = scmp.eq.s32.totalorder %s439, 0
            %p441 = pneg %p440
            // Predicated region
            $region138: #{model_with_loss_forward.1} parent=125 // pred_check
              _
            $region139: #{model_with_loss_forward.1} parent=125 // pred_check_branch
              %443 = sbr.rel (%p440) target = $region141
            $region140: #{model_with_loss_forward.1} parent=125 // pred_region
              %s444 = sand.u32 4, 7
              %s445 = ssub.s32 4, %s444
              %s446 = scalar_lea.vmem %s409, %s445
              %s447 = ssub.s32 4, %s444
              %s448 = scalar_lea.vmem %s412, %s447 [#allocation2]
              loop: start=0, step=1, limit=1
              $region142: #{model_with_loss_forward.1} parent=140 // loop_pre_header
                _
              $region143: #{model_with_loss_forward.1} parent=140 // loop_header
                %s450 = sphi 0, %s454
                %p451 = scmp.ge.s32.totalorder %s450, 1
                %s455 = sphi %s409, %s409
                %s456 = sphi %s412, %s412
              $region144: #{model_with_loss_forward.1} parent=140 // loop_header_branch
                %453 = sbr.rel (%p451) target = $region148
              $region145: #{model_with_loss_forward.1} parent=140 // loop_body
                _
              $region146: #{model_with_loss_forward.1} parent=140 // loop_footer
                %s454 = sadd.s32 1, %s450
              $region147: #{model_with_loss_forward.1} parent=140 // loop_footer_branch
                %449 = sbr.rel target = $region143
              $region148: #{model_with_loss_forward.1} parent=140 // loop_exit
                _
              %s457 = sshllo.u32 0, %s444
              loop: start=0, step=1, limit=1
              $region149: #{model_with_loss_forward.1} parent=140 // loop_pre_header
                _
              $region150: #{model_with_loss_forward.1} parent=140 // loop_header
                %s459 = sphi 0, %s463
                %p460 = scmp.ge.s32.totalorder %s459, 1
                %s464 = sphi %s446, %s446
                %s465 = sphi %s448, %s448
              $region151: #{model_with_loss_forward.1} parent=140 // loop_header_branch
                %462 = sbr.rel (%p460) target = $region155
              $region152: #{model_with_loss_forward.1} parent=140 // loop_body
                %v466 = vld [vmem:[%s464] sm:%s457]
                %467 = vst [vmem:[%s465] sm:%s457] %v466
                %v468 = vld [vmem:[%s464 + $0xc] sm:%s457]
                %469 = vst [vmem:[%s465 + $0x4] sm:%s457] %v468
                %v470 = vld [vmem:[%s464 + $0x4] sm:%s457]
                %471 = vst [vmem:[%s465 + $0x8] sm:%s457] %v470
                %v472 = vld [vmem:[%s464 + $0x10] sm:%s457]
                %473 = vst [vmem:[%s465 + $0xc] sm:%s457] %v472
              $region153: #{model_with_loss_forward.1} parent=140 // loop_footer
                %s463 = sadd.s32 1, %s459
              $region154: #{model_with_loss_forward.1} parent=140 // loop_footer_branch
                %458 = sbr.rel target = $region150
              $region155: #{model_with_loss_forward.1} parent=140 // loop_exit
                _
            $region141: #{model_with_loss_forward.1} parent=125 // pred_fallthru
              _
          $region126: #{model_with_loss_forward.1} parent=121 // pred_fallthru
            _
          // Predicated region
          $region127: #{model_with_loss_forward.1} parent=121 // pred_check
            %p419 = pneg %p415
          $region128: #{model_with_loss_forward.1} parent=121 // pred_check_branch
            %421 = sbr.rel (%p419) target = $region130
          $region129: #{model_with_loss_forward.1} parent=121 // pred_region
            %s422 = sshllo.u32 0, 4
            loop: start=0, step=1, limit=1
            $region131: #{model_with_loss_forward.1} parent=129 // loop_pre_header
              _
            $region132: #{model_with_loss_forward.1} parent=129 // loop_header
              %s424 = sphi 0, %s428
              %p425 = scmp.ge.s32.totalorder %s424, 1
              %s429 = sphi %s409, %s409
              %s430 = sphi %s412, %s412
            $region133: #{model_with_loss_forward.1} parent=129 // loop_header_branch
              %427 = sbr.rel (%p425) target = $region137
            $region134: #{model_with_loss_forward.1} parent=129 // loop_body
              %v431 = vld [vmem:[%s429] sm:%s422]
              %432 = vst [vmem:[%s430] sm:%s422] %v431
              %v433 = vld [vmem:[%s429 + $0xc] sm:%s422]
              %434 = vst [vmem:[%s430 + $0x4] sm:%s422] %v433
              %v435 = vld [vmem:[%s429 + $0x4] sm:%s422]
              %436 = vst [vmem:[%s430 + $0x8] sm:%s422] %v435
              %v437 = vld [vmem:[%s429 + $0x10] sm:%s422]
              %438 = vst [vmem:[%s430 + $0xc] sm:%s422] %v437
            $region135: #{model_with_loss_forward.1} parent=129 // loop_footer
              %s428 = sadd.s32 1, %s424
            $region136: #{model_with_loss_forward.1} parent=129 // loop_footer_branch
              %423 = sbr.rel target = $region132
            $region137: #{model_with_loss_forward.1} parent=129 // loop_exit
              _
          $region130: #{model_with_loss_forward.1} parent=121 // pred_fallthru
            _
          // Predicated region
          $region156: #{model_with_loss_forward.1} parent=121 // pred_check
            _
          $region157: #{model_with_loss_forward.1} parent=121 // pred_check_branch
            %476 = sbr.rel (0) target = $region159
          $region158: #{model_with_loss_forward.1} parent=121 // pred_region
            %477 = vsyncadd %s413, 256
          $region159: #{model_with_loss_forward.1} parent=121 // pred_fallthru
            _
        $region122: #{model_with_loss_forward.1} parent=72 // pred_fallthru
          _
        %v478 = vld [vmem:[%s3] sm:$0x1]
        %vm479 = vcmp.ge.s32.totalorder %v478, 1
        %vm480 = vcmp.le.s32.totalorder %v478, 14
        %v481 = vld [vmem:[%s389] sm:$0xff]
        %v482 = vsel %vm479, 1, 0
        %v483 = vlaneseq
        %v484 = vshrl.u32 %v483, 7
        %v485 = vsub.s32 0, %v484
        %v486 = vrot.slane %v482, %v485
        %vm487 = vcmp.eq.s32.totalorder %v486, 1
        %vm488 = vmpackc.low %vm487, %vm487
        %v489 = vsel %vm488, 65537, 0
        %v490 = vlaneseq
        %v491 = vshrl.u32 %v490, 7
        %v492 = vsub.s32 0, %v491
        %v493 = vrot.slane %v489, %v492
        %vm494 = vcmp.ne.s16.totalorder %v493, 0
        %v495 = vsel %vm494, %v481, 0
        %496 = vst [vmem:[#allocation3] sm:$0xff] %v495
        %v497 = vld [vmem:[%s389] sm:$0xff]
        %v498 = vld [vmem:[%s389 + $0x8] sm:$0xff]
        %501 = vrot.lane.b32.xlu0 %v497, 127
        %v502 = vpop.permute.xlu0 %501
        %503 = vrot.lane.b32.xlu0 %v498, 127
        %v504 = vpop.permute.xlu0 %503
        %vm505 = vcmask 1039360
        %v506 = vsel %vm505, %v502, %v504
        %508 = vst [vmem:[#allocation3 + $0x8] sm:$0xff] %v506
        %v509 = vld [vmem:[%s389] sm:$0xff]
        %v510 = vld [vmem:[%s389 + $0x8] sm:$0xff]
        %v511 = vsel %vm480, 1, 0
        %v512 = vlaneseq
        %v513 = vshrl.u32 %v512, 7
        %v514 = vsub.s32 0, %v513
        %v515 = vrot.slane %v511, %v514
        %vm516 = vcmp.eq.s32.totalorder %v515, 1
        %vm517 = vmpackc.low %vm516, %vm516
        %v518 = vsel %vm517, 65537, 0
        %v519 = vlaneseq
        %v520 = vshrl.u32 %v519, 7
        %v521 = vsub.s32 0, %v520
        %v522 = vrot.slane %v518, %v521
        %523 = vrot.lane.b32.xlu0 %v522, 2
        %v524 = vpop.permute.xlu0 %523
        %vm525 = vcmp.ne.s16.totalorder %v524, 0
        %v526 = vsel %vm525, %v509, 0
        %v527 = vsel %vm525, %v510, 0
        %530 = vrot.lane.b32.xlu0 %v526, 126
        %v531 = vpop.permute.xlu0 %530
        %532 = vrot.lane.b32.xlu0 %v527, 126
        %v533 = vpop.permute.xlu0 %532
        %vm534 = vcmask 1031168
        %v535 = vsel %vm534, %v531, %v533
        %537 = vst [vmem:[#allocation3 + $0x10] sm:$0xff] %v535
        %v538 = vld [vmem:[%s389] sm:$0xff]
        %v539 = vld [vmem:[%s389 + $0x8] sm:$0xff]
        %540 = vrot.lane.b32.xlu0 %v493, 16
        %v541 = vpop.permute.xlu0 %540
        %vm542 = vcmp.ne.s16.totalorder %v541, 0
        %v543 = vsel %vm542, %v538, 0
        %v544 = vsel %vm542, %v539, 0
        %547 = vrot.lane.b32.xlu0 %v543, 112
        %v548 = vpop.permute.xlu0 %547
        %549 = vrot.lane.b32.xlu0 %v544, 112
        %v550 = vpop.permute.xlu0 %549
        %vm551 = vcmask 916480
        %v552 = vsel %vm551, %v548, %v550
        %554 = vst [vmem:[#allocation3 + $0x18] sm:$0xff] %v552
        %v555 = vld [vmem:[%s389] sm:$0xff]
        %v556 = vld [vmem:[%s389 + $0x8] sm:$0xff]
        %559 = vrot.lane.b32.xlu0 %v555, 111
        %v560 = vpop.permute.xlu0 %559
        %561 = vrot.lane.b32.xlu0 %v556, 111
        %v562 = vpop.permute.xlu0 %561
        %vm563 = vcmask 908288
        %v564 = vsel %vm563, %v560, %v562
        %566 = vst [vmem:[#allocation3 + $0x20] sm:$0xff] %v564
        %v567 = vld [vmem:[%s389] sm:$0xff]
        %v568 = vld [vmem:[%s389 + $0x8] sm:$0xff]
        %569 = vrot.lane.b32.xlu0 %v522, 18
        %v570 = vpop.permute.xlu0 %569
        %vm571 = vcmp.ne.s16.totalorder %v570, 0
        %v572 = vsel %vm571, %v567, 0
        %v573 = vsel %vm571, %v568, 0
        %576 = vrot.lane.b32.xlu0 %v572, 110
        %v577 = vpop.permute.xlu0 %576
        %578 = vrot.lane.b32.xlu0 %v573, 110
        %v579 = vpop.permute.xlu0 %578
        %vm580 = vcmask 900096
        %v581 = vsel %vm580, %v577, %v579
        %583 = vst [vmem:[#allocation3 + $0x28] sm:$0xff] %v581
        %v584 = vld [vmem:[%s389] sm:$0xff]
        %v585 = vld [vmem:[%s389 + $0x8] sm:$0xff]
        %586 = vrot.lane.b32.xlu0 %v493, 32
        %v587 = vpop.permute.xlu0 %586
        %vm588 = vcmp.ne.s16.totalorder %v587, 0
        %v589 = vsel %vm588, %v584, 0
        %v590 = vsel %vm588, %v585, 0
        %593 = vrot.lane.b32.xlu0 %v589, 96
        %v594 = vpop.permute.xlu0 %593
        %595 = vrot.lane.b32.xlu0 %v590, 96
        %v596 = vpop.permute.xlu0 %595
        %vm597 = vcmask 785408
        %v598 = vsel %vm597, %v594, %v596
        %600 = vst [vmem:[#allocation3 + $0x30] sm:$0xff] %v598
        %v601 = vld [vmem:[%s389] sm:$0xff]
        %v602 = vld [vmem:[%s389 + $0x8] sm:$0xff]
        %605 = vrot.lane.b32.xlu0 %v601, 95
        %v606 = vpop.permute.xlu0 %605
        %607 = vrot.lane.b32.xlu0 %v602, 95
        %v608 = vpop.permute.xlu0 %607
        %vm609 = vcmask 777216
        %v610 = vsel %vm609, %v606, %v608
        %612 = vst [vmem:[#allocation3 + $0x38] sm:$0xff] %v610
        %v613 = vld [vmem:[%s389] sm:$0xff]
        %v614 = vld [vmem:[%s389 + $0x8] sm:$0xff]
        %615 = vrot.lane.b32.xlu0 %v522, 34
        %v616 = vpop.permute.xlu0 %615
        %vm617 = vcmp.ne.s16.totalorder %v616, 0
        %v618 = vsel %vm617, %v613, 0
        %v619 = vsel %vm617, %v614, 0
        %622 = vrot.lane.b32.xlu0 %v618, 94
        %v623 = vpop.permute.xlu0 %622
        %624 = vrot.lane.b32.xlu0 %v619, 94
        %v625 = vpop.permute.xlu0 %624
        %vm626 = vcmask 769024
        %v627 = vsel %vm626, %v623, %v625
        %629 = vst [vmem:[#allocation3 + $0x40] sm:$0xff] %v627
        %v630 = vld [vmem:[%s1] sm:$0xff]
        %v631 = vld [vmem:[%s1 + $0x8] sm:$0xff]
        %v632 = vld [vmem:[#allocation3] sm:$0xff]
        %v633 = vld [vmem:[#allocation3 + $0x8] sm:$0xff]
        %v634 = vld [vmem:[#allocation3 + $0x10] sm:$0xff]
        %v635 = vld [vmem:[#allocation3 + $0x18] sm:$0xff]
        %v636 = vld [vmem:[#allocation3 + $0x20] sm:$0xff]
        %v637 = vld [vmem:[#allocation3 + $0x28] sm:$0xff]
        %v638 = vld [vmem:[#allocation3 + $0x30] sm:$0xff]
        %v639 = vld [vmem:[#allocation3 + $0x38] sm:$0xff]
        %v640 = vld [vmem:[#allocation3 + $0x40] sm:$0xff]
        %v641 = vld [vmem:[%s2] sm:$0xff]
        %v642 = vld [vmem:[%s2 + $0x8] sm:$0xff]
        %644 = vset.pattern.permute.xlu0 0
        %645 = vperm.xlu0 %644, %v641
        %v646 = vpop.permute.xlu0 %645
        %649 = vset.pattern.permute.xlu0 0
        %650 = vperm.xlu0 %649, %v642
        %v651 = vpop.permute.xlu0 %650
        %v655 = vunpack.c.l.b16 %v630
        %v656 = vunpack.c.h.b16 %v630
        %v657 = vunpack.c.l.b16 %v631
        %v658 = vunpack.c.h.b16 %v631
        %v659 = vpack.c.b16 %v657, %v655
        %v660 = vpack.c.b16 %v658, %v656
        %vm662 = vcmask 130048
        %v664 = vsel %vm662, %v660, 0
        %666 = vmatprep.subr.bf16.mxu0 0
        %667 = vmatpush1.bf16.msra.mxu0 %v632
        %668 = vmatprep.subr.bf16.mxu0 0
        %669 = vmatpush1.bf16.msra.mxu0 %v633
        %670 = vmatprep.subr.bf16.mxu0 0
        %671 = vmatpush1.bf16.msra.mxu0 %v634
        %672 = vmatprep.subr.bf16.mxu0 0
        %673 = vmatpush1.bf16.msra.mxu0 %v635
        %674 = vmatprep.subr.bf16.mxu0 0
        %675 = vmatpush1.bf16.msra.mxu0 %v636
        %676 = vmatprep.subr.bf16.mxu0 0
        %677 = vmatpush1.bf16.msra.mxu0 %v637
        %678 = vmatprep.subr.bf16.mxu0 0
        %679 = vmatpush1.bf16.msra.mxu0 %v638
        %680 = vmatprep.subr.bf16.mxu0 0
        %681 = vmatpush1.bf16.msra.mxu0 %v639
        %682 = vmatprep.subr.bf16.mxu0 0
        %683 = vmatpush1.bf16.msra.mxu0 %v640
        %684 = vmatprep.subr.bf16.mxu0 0
        %685 = vmatpush1.bf16.msra.mxu0 0
        %686 = vmatprep.subr.bf16.mxu0 0
        %687 = vmatpush1.bf16.msra.mxu0 0
        %688 = vmatprep.subr.bf16.mxu0 0
        %689 = vmatpush1.bf16.msra.mxu0 0
        %690 = vmatprep.subr.bf16.mxu0 0
        %691 = vmatpush1.bf16.msra.mxu0 0
        %692 = vmatprep.subr.bf16.mxu0 0
        %693 = vmatpush1.bf16.msra.mxu0 0
        %694 = vmatprep.subr.bf16.mxu0 0
        %695 = vmatpush1.bf16.msra.mxu0 0
        %696 = vmatprep.subr.bf16.mxu0 0
        %697 = vmatpush1.bf16.msra.mxu0 0
        %698 = vmatprep.mubr.bf16.mxu0 %v664
        %699 = vmatmul.mubr.bf16.gmra.mrb[0].mxu0 %v659
        %v700 = vpop.f32.mrb[0].mxu0
        %v701 = vadd.f32 %v646, %v700
        %v702 = vpop.f32.mrb[0].mxu0
        %v703 = vpop.f32.mrb[0].mxu0
        %v704 = vadd.f32 %v651, %v703
        %v705 = vpop.f32.mrb[0].mxu0
        %706 = vdwg.mxu0
        %v707 = vxor.u32 %v701, 2147483648
        %v708 = vxor.u32 %v704, 2147483648
        %v709 = vmul.f32 %v707, 1.442695
        %v710 = vpow.pop %v709
        %v711 = vmul.f32 %v708, 1.442695
        %v712 = vpow.pop %v711
        %v713 = vadd.f32 %v710, 1.0
        %v714 = vadd.f32 %v712, 1.0
        %v715 = vrcp.pop %v713
        %v716 = vmul.f32 1.0, %v715
        %v717 = vrcp.pop %v714
        %v718 = vmul.f32 1.0, %v717
        %v719 = vpack.c.bf16 %v718, %v716
        %v721 = vunpack.c.l.b16 %v719
        %v722 = vunpack.c.h.b16 %v719
        %v723 = vpack.c.b16 %v721, %v721
        %v724 = vpack.c.b16 %v722, %v722
        %727 = vst [vmem:[%s283] sm:$0xf] %v723
        %728 = vst [vmem:[%s283 + $0x4] sm:$0xf] %v724
        %v729 = vld [vmem:[%s262] sm:$0xf]
        %v730 = vld [vmem:[%s262 + $0x4] sm:$0xf]
        %v731 = vunpack.c.l.bf16 %v729
        %v732 = vunpack.c.l.bf16 %v730
        %v733 = vsub.f32 %v716, %v731
        %v734 = vsub.f32 %v718, %v732
        %v735 = vmul.f32 %v733, %v733
        %v736 = vmul.f32 %v734, %v734
        %v737 = vld [vmem:[%s295] sm:$0xff]
        %v738 = vld [vmem:[%s295 + $0x8] sm:$0xff]
        %v739 = vadd.f32 %v737, %v735
        %v740 = vadd.f32 %v738, %v736
        %741 = vst [vmem:[%s295] sm:$0xff] %v739
        %742 = vst [vmem:[%s295 + $0x8] sm:$0xff] %v740
        %s743 = sand.u32 %s131, 1
        %s744 = sand.u32 %s131, 1
        %s745 = smul.addr %s744, 8
        %s746 = scalar_lea.vmem [#allocation6], %s745
        %p747 = scmp.lt.s32.totalorder %s22, 1
        %s748 = scalar_select %p747, %s22, 1
        %s749 = smul.addr %s748, 2
        %s750 = smul.addr %s749, 8
        %s751 = scalar_lea.vmem %s6, %s750
        // Predicated region
        $region160: #{model_with_loss_forward.1} parent=72 // pred_check
          %p752 = pneg %p141
        $region161: #{model_with_loss_forward.1} parent=72 // pred_check_branch
          %754 = sbr.rel (%p752) target = $region163
        $region162: #{model_with_loss_forward.1} parent=72 // pred_region
          %s755 = smul.addr %s22, 4
          %s756 = sadd.s32 %s23, %s755
          %s757 = smul.addr %s756, 4
          %s758 = scalar_lea.vmem %s5, %s757
          // Predicated region
          $region164: #{model_with_loss_forward.1} parent=162 // pred_check
            _
          $region165: #{model_with_loss_forward.1} parent=162 // pred_check_branch
            %760 = sbr.rel (0) target = $region167
          $region166: #{model_with_loss_forward.1} parent=162 // pred_region
            // Predicated region
            $region168: #{model_with_loss_forward.1} parent=166 // pred_check
              _
            $region169: #{model_with_loss_forward.1} parent=166 // pred_check_branch
              %762 = sbr.rel target = $region171
            $region170: #{model_with_loss_forward.1} parent=166 // pred_region
              // Predicated region
              $region183: #{model_with_loss_forward.1} parent=170 // pred_check
                _
              $region184: #{model_with_loss_forward.1} parent=170 // pred_check_branch
                %779 = sbr.rel (0) target = $region186
              $region185: #{model_with_loss_forward.1} parent=170 // pred_region
                loop: start=0, step=1, limit=1
                $region187: #{model_with_loss_forward.1} parent=185 // loop_pre_header
                  _
                $region188: #{model_with_loss_forward.1} parent=185 // loop_header
                  %s781 = sphi 0, %s785
                  %p782 = scmp.ge.s32.totalorder %s781, 1
                  %s786 = sphi %s746, %s746
                  %s787 = sphi %s758, %s758
                $region189: #{model_with_loss_forward.1} parent=185 // loop_header_branch
                  %784 = sbr.rel (%p782) target = $region193
                $region190: #{model_with_loss_forward.1} parent=185 // loop_body
                  _
                $region191: #{model_with_loss_forward.1} parent=185 // loop_footer
                  %s785 = sadd.s32 1, %s781
                $region192: #{model_with_loss_forward.1} parent=185 // loop_footer_branch
                  %780 = sbr.rel target = $region188
                $region193: #{model_with_loss_forward.1} parent=185 // loop_exit
                  _
                loop: start=0, step=1, limit=1
                $region194: #{model_with_loss_forward.1} parent=185 // loop_pre_header
                  _
                $region195: #{model_with_loss_forward.1} parent=185 // loop_header
                  %s790 = sphi 0, %s794
                  %p791 = scmp.ge.s32.totalorder %s790, 1
                  %s795 = sphi %s746, %s746
                  %s796 = sphi %s758, %s758
                $region196: #{model_with_loss_forward.1} parent=185 // loop_header_branch
                  %793 = sbr.rel (%p791) target = $region200
                $region197: #{model_with_loss_forward.1} parent=185 // loop_body
                  %v797 = vld [vmem:[%s795] sm:$0xf]
                  %798 = vst [vmem:[%s796] sm:$0xf] %v797
                  %v799 = vld [vmem:[%s795 + $0x4] sm:$0xf]
                  %800 = vst [vmem:[%s796 + $0x8] sm:$0xf] %v799
                $region198: #{model_with_loss_forward.1} parent=185 // loop_footer
                  %s794 = sadd.s32 1, %s790
                $region199: #{model_with_loss_forward.1} parent=185 // loop_footer_branch
                  %789 = sbr.rel target = $region195
                $region200: #{model_with_loss_forward.1} parent=185 // loop_exit
                  _
              $region186: #{model_with_loss_forward.1} parent=170 // pred_fallthru
                _
            $region171: #{model_with_loss_forward.1} parent=166 // pred_fallthru
              _
            // Predicated region
            $region172: #{model_with_loss_forward.1} parent=166 // pred_check
              _
            $region173: #{model_with_loss_forward.1} parent=166 // pred_check_branch
              %764 = sbr.rel (0) target = $region175
            $region174: #{model_with_loss_forward.1} parent=166 // pred_region
              loop: start=0, step=1, limit=1
              $region176: #{model_with_loss_forward.1} parent=174 // loop_pre_header
                _
              $region177: #{model_with_loss_forward.1} parent=174 // loop_header
                %s767 = sphi 0, %s771
                %p768 = scmp.ge.s32.totalorder %s767, 1
                %s772 = sphi %s746, %s746
                %s773 = sphi %s758, %s758
              $region178: #{model_with_loss_forward.1} parent=174 // loop_header_branch
                %770 = sbr.rel (%p768) target = $region182
              $region179: #{model_with_loss_forward.1} parent=174 // loop_body
                %v774 = vld [vmem:[%s772] sm:$0xf]
                %775 = vst [vmem:[%s773] sm:$0xf] %v774
                %v776 = vld [vmem:[%s772 + $0x4] sm:$0xf]
                %777 = vst [vmem:[%s773 + $0x8] sm:$0xf] %v776
              $region180: #{model_with_loss_forward.1} parent=174 // loop_footer
                %s771 = sadd.s32 1, %s767
              $region181: #{model_with_loss_forward.1} parent=174 // loop_footer_branch
                %766 = sbr.rel target = $region177
              $region182: #{model_with_loss_forward.1} parent=174 // loop_exit
                _
            $region175: #{model_with_loss_forward.1} parent=166 // pred_fallthru
              _
          $region167: #{model_with_loss_forward.1} parent=162 // pred_fallthru
            _
          %801 = vnop
        $region163: #{model_with_loss_forward.1} parent=72 // pred_fallthru
          _
        // Predicated region
        $region201: #{model_with_loss_forward.1} parent=72 // pred_check
          %p802 = pneg %p167
        $region202: #{model_with_loss_forward.1} parent=72 // pred_check_branch
          %804 = sbr.rel (%p802) target = $region204
        $region203: #{model_with_loss_forward.1} parent=72 // pred_region
          _
        $region204: #{model_with_loss_forward.1} parent=72 // pred_fallthru
          _
      $region73: #{model_with_loss_forward.1} parent=5 // pred_fallthru
        _
      %p805 = scmp.le.s32.totalorder 2, %s13
      // Predicated region
      $region205: #{model_with_loss_forward.1} parent=5 // pred_check
        %p806 = pneg %p805
      $region206: #{model_with_loss_forward.1} parent=5 // pred_check_branch
        %808 = sbr.rel (%p806) target = $region208
      $region207: #{model_with_loss_forward.1} parent=5 // pred_region
        %s809 = ssub.s32 %s13, 2
        // Predicated region
        $region209: #{model_with_loss_forward.1} parent=207 // pred_check
          %p810 = pneg %p147
        $region210: #{model_with_loss_forward.1} parent=207 // pred_check_branch
          %812 = sbr.rel (%p810) target = $region212
        $region211: #{model_with_loss_forward.1} parent=207 // pred_region
          %s813 = sand.u32 %s132, 1
          %s814 = sand.u32 %s132, 1
          %s815 = smul.addr %s814, 8
          %s816 = scalar_lea.vmem [#allocation6], %s815
        $region212: #{model_with_loss_forward.1} parent=207 // pred_fallthru
          _
        // Predicated region
        $region213: #{model_with_loss_forward.1} parent=207 // pred_check
          %p817 = pneg %p173
        $region214: #{model_with_loss_forward.1} parent=207 // pred_check_branch
          %819 = sbr.rel (%p817) target = $region216
        $region215: #{model_with_loss_forward.1} parent=207 // pred_region
          %p820 = scmp.lt.s32.totalorder %s24, 1
          %s821 = scalar_select %p820, %s24, 1
          %s822 = smul.addr %s821, 2
          %s823 = smul.addr %s822, 8
          %s824 = scalar_lea.vmem %s6, %s823
        $region216: #{model_with_loss_forward.1} parent=207 // pred_fallthru
          _
      $region208: #{model_with_loss_forward.1} parent=5 // pred_fallthru
        _
    $region6: #{model_with_loss_forward.1} parent=1 // loop_footer
      %s17 = sadd.s32 1, %s13
    $region7: #{model_with_loss_forward.1} parent=1 // loop_footer_branch
      %12 = sbr.rel target = $region3
    $region8: #{model_with_loss_forward.1} parent=1 // loop_exit
      _
  %825 = vsyncmov [#allocation4]
  %s826 = vpop.sfrf %825
  %p827 = scmp.eq.s32.totalorder %s826, 0
  %p828 = pneg %p827
  %830 = shalt.err (%p828)
  %s831 = scalar_lea.sflag [#allocation4], 1
  %832 = vsyncmov %s831
  %s833 = vpop.sfrf %832
  %p834 = scmp.eq.s32.totalorder %s833, 0
  %p835 = pneg %p834
  %837 = shalt.err (%p835)

</llo_original>
